<compile_context>
chip_gen: v6e
topology: v6e:2x2x1
jax: 0.10.0
libtpu: 0.0.40
codegen_flags: <defaults>
</compile_context>

<pallas_src>
import functools

import numpy as np
import jax
import jax.numpy as jnp
from jax import lax
from jax.experimental import pallas as pl
from jax.experimental.pallas import tpu as pltpu

EPS = 1e-5


# ----------------------------------------------------------------------------
# Fused forward kernel (5 MXU dots, lane-dense output slab)
# ----------------------------------------------------------------------------
def _fused_forward_kernel(xf_ref, wa_ref, wb_ref, wdec_ref, b0_ref, w1_ref,
                          b1_ref, w2_ref, out_ref, *, enc_in):
    xf = xf_ref[...]                       # (B, L*C) raw series, flattened
    B = xf.shape[0]
    C = enc_in
    LC = xf.shape[1]
    TC = wdec_ref.shape[1]                 # (label_len + pred_len) * C
    H2 = w1_ref.shape[0]                   # 2 * p_hidden_dims[0]

    # ---- dot 1: [x ; x^2] @ [mean-reduce | conv-folded first layer] ---------
    s2 = jnp.concatenate([xf, xf * xf], axis=0)                       # (2B, LC)
    r1 = jnp.dot(s2, wa_ref[...], preferred_element_type=jnp.float32)  # (2B, C+H2)
    mean = r1[:B, :C]                      # per-channel mean over seq
    ex2 = r1[B:, :C]                       # per-channel E[x^2] over seq
    xw = r1[:B, C:]                        # conv-folded W0 contribution (B, H2)

    var = ex2 - mean * mean                # biased variance (unbiased=False)
    std = jnp.sqrt(var + EPS)

    # ---- dot 2: every std/mean consumer in one stacked matmul ---------------
    sm = jnp.concatenate([std, mean], axis=0)                          # (2B, C)
    r2 = jnp.dot(sm, wb_ref[...], preferred_element_type=jnp.float32)  # (2B, LC+TC+2H2)
    std_f = r2[:B, :LC]                    # std broadcast over seq
    mean_f = r2[B:, :LC]                   # mean broadcast over seq
    std_t = r2[:B, LC:LC + TC]             # std broadcast over label+pred
    mean_t = r2[B:, LC:LC + TC]            # mean broadcast over label+pred
    h_stat = (r2[:B, LC + TC:LC + TC + H2]             # std  @ W0_tau[stats]
              + r2[B:, LC + TC + H2:LC + TC + 2 * H2])  # mean @ W0_delta[stats]

    x_norm = (xf - mean_f) / std_f                                     # (B, LC)

    # ---- dot 3: decoder part (last-label selection + mean-repeat folded) ----
    # TODO(synk): encoder/decoder stack unavailable -> seasonal_part/trend_part
    # := seasonal_init/trend_init; their sum is exactly this selection + the
    # repeated mean of x_norm (the moving-average decomposition cancels).
    dec = jnp.dot(x_norm, wdec_ref[...], preferred_element_type=jnp.float32)
    dec_out = dec * std_t + mean_t         # de-normalization             (B, TC)

    # ---- projector MLP (tau + delta fused block-diagonally) -----------------
    h = jnp.maximum(xw + h_stat + b0_ref[...], 0.0)
    h = jnp.maximum(
        jnp.dot(h, w1_ref[...], preferred_element_type=jnp.float32) + b1_ref[...],
        0.0)
    y = jnp.dot(h, w2_ref[...], preferred_element_type=jnp.float32)   # (B, 1+S)
    col = lax.broadcasted_iota(jnp.int32, y.shape, 1)
    proj = jnp.where(col == 0, jnp.exp(y), y)   # exp only on tau (EUP + VPU)

    # ---- single lane-dense, 128-padded output slab --------------------------
    pad = out_ref.shape[1] - TC - y.shape[1]
    pieces = [dec_out, proj]
    if pad > 0:
        pieces.append(jnp.zeros((B, pad), jnp.float32))
    out_ref[...] = jnp.concatenate(pieces, axis=-1)


# ----------------------------------------------------------------------------
# Static helper matrices (built from static shapes only, at trace time)
# ----------------------------------------------------------------------------
def _build_static_mats(L, C, label_len, pred_len, total):
    eye = np.eye(C, dtype=np.float32)
    smean = np.kron(np.full((L, 1), 1.0 / L, np.float32), eye)   # (L*C, C)
    tseq = np.tile(eye, (1, L))                                  # (C, L*C)
    ttot = np.tile(eye, (1, total))                              # (C, total*C)
    tpred = np.tile(eye, (1, pred_len))                          # (C, pred*C)
    # selection of the last label_len steps out of the flat (L*C) layout
    sel = np.zeros((L * C, label_len * C), np.float32)
    for j in range(label_len):
        for c in range(C):
            sel[(L - label_len + j) * C + c, j * C + c] = 1.0
    return smean, tseq, ttot, tpred, sel


def _block_diag(a, b):
    za = jnp.zeros((a.shape[0], b.shape[1]), a.dtype)
    zb = jnp.zeros((b.shape[0], a.shape[1]), b.dtype)
    return jnp.concatenate(
        [jnp.concatenate([a, za], axis=1), jnp.concatenate([zb, b], axis=1)],
        axis=0)


def _combine_projector_params(p_tau, p_delta, enc_in, seq_len):
    """Fold the circular Conv1d into layer 0 and fuse the two projector MLPs."""
    C = enc_in
    L = seq_len
    K = p_tau["cw"].shape[1]
    # circular conv (padding=1): conv[b, j] = sum_{l,k} w[l,k] x[b, l, (j+k-1)%C]
    phi = np.zeros((K, C, C), np.float32)
    for k in range(K):
        for j in range(C):
            phi[k, (j + k - 1) % C, j] = 1.0
    phi = jnp.asarray(phi)

    def conv_mat(cw):                      # (L*C, C): x_flat @ A == conv output
        return jnp.einsum('lk,kij->lij', cw, phi).reshape(L * C, C)

    # conv part of layer 0, folded through the conv matrix (applied to x_raw)
    wx = jnp.concatenate([conv_mat(p_tau["cw"]) @ p_tau["w0"][:C],
                          conv_mat(p_delta["cw"]) @ p_delta["w0"][:C]], axis=1)
    # stats part of layer 0: tau consumes std, delta consumes mean
    h0 = p_tau["w0"].shape[1]
    zc = jnp.zeros((C, h0), jnp.float32)
    ws_top = jnp.concatenate([p_tau["w0"][C:], zc], axis=1)      # * std rows
    ws_bot = jnp.concatenate([zc, p_delta["w0"][C:]], axis=1)    # * mean rows
    b0c = jnp.concatenate([p_tau["b0"], p_delta["b0"]], axis=1)
    w1c = _block_diag(p_tau["w1"], p_delta["w1"])
    b1c = jnp.concatenate([p_tau["b1"], p_delta["b1"]], axis=1)
    w2c = _block_diag(p_tau["w2"], p_delta["w2"])                # (2H1, 1+S)
    return wx, ws_top, ws_bot, b0c, w1c, b1c, w2c


# ----------------------------------------------------------------------------
# Parameter construction (deterministic, synthetic)
# ----------------------------------------------------------------------------
def init_projector_params(key, enc_in, seq_len, hidden_dims, output_dim,
                          kernel_size=3):
    k0, k1, k2, k3 = jax.random.split(key, 4)
    scale = 0.1
    return {
        # PyTorch Conv1d weight (1, seq_len, K) -> stored as (seq_len, K)
        "cw": scale * jax.random.normal(k0, (seq_len, kernel_size), jnp.float32),
        "w0": scale * jax.random.normal(k1, (2 * enc_in, hidden_dims[0]), jnp.float32),
        "b0": jnp.zeros((1, hidden_dims[0]), jnp.float32),
        "w1": scale * jax.random.normal(k2, (hidden_dims[0], hidden_dims[1]), jnp.float32),
        "b1": jnp.zeros((1, hidden_dims[1]), jnp.float32),
        "w2": scale * jax.random.normal(k3, (hidden_dims[1], output_dim), jnp.float32),
    }


# ----------------------------------------------------------------------------
# Model forward (default branch) -- single fused pallas_call
# ----------------------------------------------------------------------------
def model_forward(params, x_enc, x_mark_enc, x_dec, x_mark_dec, *,
                  seq_len, label_len, pred_len):
    del x_mark_enc, x_mark_dec, x_dec  # only consumed by the (unprovided) embeddings
    B, L, C = x_enc.shape
    total = label_len + pred_len

    xf = x_enc.astype(jnp.float32).reshape(B, L * C)     # lane-dense raw series

    smean, tseq, ttot, tpred, sel = _build_static_mats(L, C, label_len,
                                                       pred_len, total)
    wx, ws_top, ws_bot, b0c, w1c, b1c, w2c = _combine_projector_params(
        params["tau"], params["delta"], C, L)

    # merged weight slabs (built once at trace time)
    w_a = jnp.concatenate([jnp.asarray(smean), wx], axis=1)            # (LC, C+2H0)
    w_b = jnp.concatenate([jnp.asarray(tseq), jnp.asarray(ttot),
                           ws_top, ws_bot], axis=1)                    # (C, LC+TC+4H0)
    w_dec = jnp.asarray(np.concatenate([sel, smean @ tpred], axis=1))  # (LC, TC)

    proj_w = 1 + seq_len
    out_w = 128 * pl.cdiv(total * C + proj_w, 128)       # lane-dense output slab

    vmem = pl.BlockSpec(memory_space=pltpu.MemorySpace.VMEM)
    out = pl.pallas_call(
        functools.partial(_fused_forward_kernel, enc_in=C),
        out_shape=jax.ShapeDtypeStruct((B, out_w), jnp.float32),
        in_specs=[vmem] * 8,
        out_specs=vmem,
    )(xf, w_a, w_b, w_dec, b0c, w1c, b1c, w2c)

    tc = total * C
    dec_out = out[:, :tc].reshape(B, total, C)[:, -pred_len:, :]
    tau = out[:, tc:tc + 1]                # already exp()'d in-kernel
    delta = out[:, tc + 1:tc + 1 + seq_len]
    return dec_out, tau, delta


# ----------------------------------------------------------------------------
if __name__ == "__main__":
    # small config consistent with the module
    B, enc_in = 2, 4
    seq_len, label_len, pred_len = 16, 8, 8
    p_hidden_dims = [32, 32]        # p_hidden_layers = 2
    mark_dim = 4

    key = jax.random.PRNGKey(0)
    k_x, k_me, k_xd, k_md, k_tau, k_delta = jax.random.split(key, 6)

    x_enc = jax.random.normal(k_x, (B, seq_len, enc_in), jnp.float32)
    x_mark_enc = jax.random.normal(k_me, (B, seq_len, mark_dim), jnp.float32)
    x_dec = jax.random.normal(k_xd, (B, label_len + pred_len, enc_in), jnp.float32)
    x_mark_dec = jax.random.normal(k_md, (B, label_len + pred_len, mark_dim),
                                   jnp.float32)

    params = {
        "tau": init_projector_params(k_tau, enc_in, seq_len, p_hidden_dims,
                                     output_dim=1),
        "delta": init_projector_params(k_delta, enc_in, seq_len, p_hidden_dims,
                                       output_dim=seq_len),
    }

    fwd = jax.jit(functools.partial(model_forward,
                                    seq_len=seq_len, label_len=label_len,
                                    pred_len=pred_len))
    dec_out, tau, delta = fwd(params, x_enc, x_mark_enc, x_dec, x_mark_dec)
    jax.block_until_ready((dec_out, tau, delta))

    assert dec_out.shape == (B, pred_len, enc_in)
    assert tau.shape == (B, 1)
    assert delta.shape == (B, seq_len)
    print("KERNEL_OK")
</pallas_src>

<mosaic_0001>
module attributes {stable_mosaic.version = 11 : i64} {
  func.func @_fused_forward_kernel(%arg0: memref<2x64xf32, #tpu.memory_space<vmem>>, %arg1: memref<64x68xf32, #tpu.memory_space<vmem>>, %arg2: memref<4x256xf32, #tpu.memory_space<vmem>>, %arg3: memref<64x64xf32, #tpu.memory_space<vmem>>, %arg4: memref<1x64xf32, #tpu.memory_space<vmem>>, %arg5: memref<64x64xf32, #tpu.memory_space<vmem>>, %arg6: memref<1x64xf32, #tpu.memory_space<vmem>>, %arg7: memref<64x17xf32, #tpu.memory_space<vmem>>, %arg8: memref<2x128xf32, #tpu.memory_space<vmem>>) attributes {dimension_semantics = [], scalar_prefetch = 0 : i64, scratch_operands = 0 : i64, tpu.core_type = #tpu.core_type<tc>} {
    %c0 = arith.constant 0 : index
    %c0_0 = arith.constant 0 : index
    %0 = vector.load %arg0[%c0, %c0_0] : memref<2x64xf32, #tpu.memory_space<vmem>>, vector<2x64xf32>
    %1 = arith.mulf %0, %0 : vector<2x64xf32>
    %2 = tpu.concatenate %0, %1 in 0 : vector<2x64xf32>, vector<2x64xf32> -> vector<4x64xf32>
    %c0_1 = arith.constant 0 : index
    %c0_2 = arith.constant 0 : index
    %3 = vector.load %arg1[%c0_1, %c0_2] : memref<64x68xf32, #tpu.memory_space<vmem>>, vector<64x68xf32>
    %cst = arith.constant dense<0.000000e+00> : vector<4x68xf32>
    %4 = tpu.matmul %2, %3, %cst {dimension_numbers = #tpu.dot_dimension_numbers<[1], [0], [0], [1], [0, 0, 1, 1], [], []>} : vector<4x64xf32>, vector<64x68xf32>, vector<4x68xf32> -> vector<4x68xf32>
    %5 = vector.extract_strided_slice %4 {offsets = [0, 0], sizes = [2, 4], strides = [1, 1]} : vector<4x68xf32> to vector<2x4xf32>
    %6 = vector.extract_strided_slice %4 {offsets = [2, 0], sizes = [2, 4], strides = [1, 1]} : vector<4x68xf32> to vector<2x4xf32>
    %7 = vector.extract_strided_slice %4 {offsets = [0, 4], sizes = [2, 64], strides = [1, 1]} : vector<4x68xf32> to vector<2x64xf32>
    %8 = arith.mulf %5, %5 : vector<2x4xf32>
    %9 = arith.subf %6, %8 : vector<2x4xf32>
    %cst_3 = arith.constant 9.99999974E-6 : f32
    %10 = vector.broadcast %cst_3 : f32 to vector<2x4xf32>
    %11 = arith.addf %9, %10 : vector<2x4xf32>
    %12 = math.sqrt %11 : vector<2x4xf32>
    %13 = tpu.concatenate %12, %5 in 0 : vector<2x4xf32>, vector<2x4xf32> -> vector<4x4xf32>
    %c0_4 = arith.constant 0 : index
    %c0_5 = arith.constant 0 : index
    %14 = vector.load %arg2[%c0_4, %c0_5] : memref<4x256xf32, #tpu.memory_space<vmem>>, vector<4x256xf32>
    %cst_6 = arith.constant dense<0.000000e+00> : vector<4x256xf32>
    %15 = tpu.matmul %13, %14, %cst_6 {dimension_numbers = #tpu.dot_dimension_numbers<[1], [0], [0], [1], [0, 0, 1, 1], [], []>} : vector<4x4xf32>, vector<4x256xf32>, vector<4x256xf32> -> vector<4x256xf32>
    %16 = vector.extract_strided_slice %15 {offsets = [0, 0], sizes = [2, 64], strides = [1, 1]} : vector<4x256xf32> to vector<2x64xf32>
    %17 = vector.extract_strided_slice %15 {offsets = [2, 0], sizes = [2, 64], strides = [1, 1]} : vector<4x256xf32> to vector<2x64xf32>
    %18 = vector.extract_strided_slice %15 {offsets = [0, 64], sizes = [2, 64], strides = [1, 1]} : vector<4x256xf32> to vector<2x64xf32>
    %19 = vector.extract_strided_slice %15 {offsets = [2, 64], sizes = [2, 64], strides = [1, 1]} : vector<4x256xf32> to vector<2x64xf32>
    %20 = vector.extract_strided_slice %15 {offsets = [0, 128], sizes = [2, 64], strides = [1, 1]} : vector<4x256xf32> to vector<2x64xf32>
    %21 = vector.extract_strided_slice %15 {offsets = [2, 192], sizes = [2, 64], strides = [1, 1]} : vector<4x256xf32> to vector<2x64xf32>
    %22 = arith.addf %20, %21 : vector<2x64xf32>
    %23 = arith.subf %0, %17 : vector<2x64xf32>
    %24 = arith.divf %23, %16 : vector<2x64xf32>
    %c0_7 = arith.constant 0 : index
    %c0_8 = arith.constant 0 : index
    %25 = vector.load %arg3[%c0_7, %c0_8] : memref<64x64xf32, #tpu.memory_space<vmem>>, vector<64x64xf32>
    %cst_9 = arith.constant dense<0.000000e+00> : vector<2x64xf32>
    %26 = tpu.matmul %24, %25, %cst_9 {dimension_numbers = #tpu.dot_dimension_numbers<[1], [0], [0], [1], [0, 0, 1, 1], [], []>} : vector<2x64xf32>, vector<64x64xf32>, vector<2x64xf32> -> vector<2x64xf32>
    %27 = arith.mulf %26, %18 : vector<2x64xf32>
    %28 = arith.addf %27, %19 : vector<2x64xf32>
    %29 = arith.addf %7, %22 : vector<2x64xf32>
    %c0_10 = arith.constant 0 : index
    %c0_11 = arith.constant 0 : index
    %30 = vector.load %arg4[%c0_10, %c0_11] : memref<1x64xf32, #tpu.memory_space<vmem>>, vector<1x64xf32>
    %31 = vector.broadcast %30 : vector<1x64xf32> to vector<2x64xf32>
    %32 = arith.addf %29, %31 : vector<2x64xf32>
    %cst_12 = arith.constant 0.000000e+00 : f32
    %33 = vector.broadcast %cst_12 : f32 to vector<2x64xf32>
    %34 = arith.maximumf %32, %33 : vector<2x64xf32>
    %c0_13 = arith.constant 0 : index
    %c0_14 = arith.constant 0 : index
    %35 = vector.load %arg5[%c0_13, %c0_14] : memref<64x64xf32, #tpu.memory_space<vmem>>, vector<64x64xf32>
    %cst_15 = arith.constant dense<0.000000e+00> : vector<2x64xf32>
    %36 = tpu.matmul %34, %35, %cst_15 {dimension_numbers = #tpu.dot_dimension_numbers<[1], [0], [0], [1], [0, 0, 1, 1], [], []>} : vector<2x64xf32>, vector<64x64xf32>, vector<2x64xf32> -> vector<2x64xf32>
    %c0_16 = arith.constant 0 : index
    %c0_17 = arith.constant 0 : index
    %37 = vector.load %arg6[%c0_16, %c0_17] : memref<1x64xf32, #tpu.memory_space<vmem>>, vector<1x64xf32>
    %38 = vector.broadcast %37 : vector<1x64xf32> to vector<2x64xf32>
    %39 = arith.addf %36, %38 : vector<2x64xf32>
    %cst_18 = arith.constant 0.000000e+00 : f32
    %40 = vector.broadcast %cst_18 : f32 to vector<2x64xf32>
    %41 = arith.maximumf %39, %40 : vector<2x64xf32>
    %c0_19 = arith.constant 0 : index
    %c0_20 = arith.constant 0 : index
    %42 = vector.load %arg7[%c0_19, %c0_20] : memref<64x17xf32, #tpu.memory_space<vmem>>, vector<64x17xf32>
    %cst_21 = arith.constant dense<0.000000e+00> : vector<2x17xf32>
    %43 = tpu.matmul %41, %42, %cst_21 {dimension_numbers = #tpu.dot_dimension_numbers<[1], [0], [0], [1], [0, 0, 1, 1], [], []>} : vector<2x64xf32>, vector<64x17xf32>, vector<2x17xf32> -> vector<2x17xf32>
    %44 = tpu.iota {dimensions = array<i32: 1>} : vector<2x17xi32>
    %c0_i32 = arith.constant 0 : i32
    %45 = vector.broadcast %c0_i32 : i32 to vector<2x17xi32>
    %46 = arith.cmpi eq, %44, %45 : vector<2x17xi32>
    %47 = math.exp %43 : vector<2x17xf32>
    %48 = arith.select %46, %47, %43 : vector<2x17xi1>, vector<2x17xf32>
    %cst_22 = arith.constant 0.000000e+00 : f32
    %49 = vector.broadcast %cst_22 : f32 to vector<2x47xf32>
    %50 = tpu.concatenate %28, %48, %49 in 1 : vector<2x64xf32>, vector<2x17xf32>, vector<2x47xf32> -> vector<2x128xf32>
    %c0_23 = arith.constant 0 : index
    %c0_24 = arith.constant 0 : index
    %51 = vector.load %arg8[%c0_23, %c0_24] : memref<2x128xf32, #tpu.memory_space<vmem>>, vector<2x128xf32>
    tpu.vector_store %arg8[%c0_23, %c0_24], %50 {strides = array<i32>} : memref<2x128xf32, #tpu.memory_space<vmem>>, vector<2x128xf32>,
    return
  }
}

</mosaic_0001>

<llo_original>
// kernel: model_forward.1
$region0: #{model_forward.1}
  #allocation0 [shape = 'u32[]', space=smem, size = 0x4, offset = 0x4, fixed_abs, tag = 'smem constant byte address 0x4 - core index']
  #allocation1 [shape = 'u32[144,128]{1,0:T(1,128)}', space=vmem, size = 0x12000, scoped, tag = 'internal scratch']
  %s0 = inlined_call_operand.vmem [shape: f32[2,64], index: 0, kind: input, shape index: {}]
  %s1 = inlined_call_operand.vmem [shape: f32[64,68], index: 1, kind: input, shape index: {}]
  %s2 = inlined_call_operand.vmem [shape: f32[4,256], index: 2, kind: input, shape index: {}]
  %s3 = inlined_call_operand.vmem [shape: f32[64,64], index: 3, kind: input, shape index: {}]
  %s4 = inlined_call_operand.vmem [shape: f32[1,64], index: 4, kind: input, shape index: {}]
  %s5 = inlined_call_operand.vmem [shape: f32[64,64], index: 5, kind: input, shape index: {}]
  %s6 = inlined_call_operand.vmem [shape: f32[1,64], index: 6, kind: input, shape index: {}]
  %s7 = inlined_call_operand.vmem [shape: f32[64,17], index: 7, kind: input, shape index: {}]
  %s8 = inlined_call_operand.vmem [shape: f32[2,128], index: 8, kind: output, shape index: {}]
  %s9 = sld [smem:[#allocation0]]
  $region42: #{model_forward.1} parent=0
    _
  %s11 = ssub.s32 1, %s9
  %s12 = scalar_select 0, %s11, %s9
  // Predicated region
  $region2: #{model_forward.1} parent=0 // pred_check
    _
  $region3: #{model_forward.1} parent=0 // pred_check_branch
    %14 = sbr.rel (0) target = $region5
  $region4: #{model_forward.1} parent=0 // pred_region
    _
  $region5: #{model_forward.1} parent=0 // pred_fallthru
    _
  // Predicated region
  $region6: #{model_forward.1} parent=0 // pred_check
    _
  $region7: #{model_forward.1} parent=0 // pred_check_branch
    %16 = sbr.rel (0) target = $region9
  $region8: #{model_forward.1} parent=0 // pred_region
    _
  $region9: #{model_forward.1} parent=0 // pred_fallthru
    _
  // Predicated region
  $region10: #{model_forward.1} parent=0 // pred_check
    _
  $region11: #{model_forward.1} parent=0 // pred_check_branch
    %18 = sbr.rel (0) target = $region13
  $region12: #{model_forward.1} parent=0 // pred_region
    _
  $region13: #{model_forward.1} parent=0 // pred_fallthru
    _
  // Predicated region
  $region14: #{model_forward.1} parent=0 // pred_check
    _
  $region15: #{model_forward.1} parent=0 // pred_check_branch
    %20 = sbr.rel (0) target = $region17
  $region16: #{model_forward.1} parent=0 // pred_region
    _
  $region17: #{model_forward.1} parent=0 // pred_fallthru
    _
  // Predicated region
  $region18: #{model_forward.1} parent=0 // pred_check
    _
  $region19: #{model_forward.1} parent=0 // pred_check_branch
    %22 = sbr.rel (0) target = $region21
  $region20: #{model_forward.1} parent=0 // pred_region
    _
  $region21: #{model_forward.1} parent=0 // pred_fallthru
    _
  // Predicated region
  $region22: #{model_forward.1} parent=0 // pred_check
    _
  $region23: #{model_forward.1} parent=0 // pred_check_branch
    %24 = sbr.rel (0) target = $region25
  $region24: #{model_forward.1} parent=0 // pred_region
    _
  $region25: #{model_forward.1} parent=0 // pred_fallthru
    _
  // Predicated region
  $region26: #{model_forward.1} parent=0 // pred_check
    _
  $region27: #{model_forward.1} parent=0 // pred_check_branch
    %26 = sbr.rel (0) target = $region29
  $region28: #{model_forward.1} parent=0 // pred_region
    _
  $region29: #{model_forward.1} parent=0 // pred_fallthru
    _
  // Predicated region
  $region30: #{model_forward.1} parent=0 // pred_check
    _
  $region31: #{model_forward.1} parent=0 // pred_check_branch
    %28 = sbr.rel (0) target = $region33
  $region32: #{model_forward.1} parent=0 // pred_region
    _
  $region33: #{model_forward.1} parent=0 // pred_fallthru
    _
  %v29 = vld [vmem:[%s0] sm:$0x3]
  %v30 = vmul.f32 %v29, %v29
  %v32 = vrot.slane %v30, 6
  %vm34 = vcmask 1041408
  %v35 = vsel %vm34, %v29, %v32
  %v36 = vld [vmem:[%s1] sm:$0xff]
  %v37 = vld [vmem:[%s1 + $0x8] sm:$0xff]
  %v38 = vld [vmem:[%s1 + $0x10] sm:$0xff]
  %v39 = vld [vmem:[%s1 + $0x18] sm:$0xff]
  %v40 = vld [vmem:[%s1 + $0x20] sm:$0xff]
  %v41 = vld [vmem:[%s1 + $0x28] sm:$0xff]
  %v42 = vld [vmem:[%s1 + $0x30] sm:$0xff]
  %v43 = vld [vmem:[%s1 + $0x38] sm:$0xff]
  %vm44 = vcmask 523264
  %v46 = vsel %vm44, %v35, 0
  %48 = vmatprep.subr.mxu0 0.0
  %49 = vmatpush1.msra.mxu0 0.0
  %50 = vmatprep.subr.mxu0 0.0
  %51 = vmatpush1.msra.mxu0 0.0
  %52 = vmatprep.subr.mxu0 0.0
  %53 = vmatpush1.msra.mxu0 0.0
  %54 = vmatprep.subr.mxu0 0.0
  %55 = vmatpush1.msra.mxu0 0.0
  %56 = vmatprep.subr.mxu0 0.0
  %57 = vmatpush1.msra.mxu0 0.0
  %58 = vmatprep.subr.mxu0 0.0
  %59 = vmatpush1.msra.mxu0 0.0
  %60 = vmatprep.subr.mxu0 0.0
  %61 = vmatpush1.msra.mxu0 0.0
  %62 = vmatprep.subr.mxu0 0.0
  %63 = vmatpush1.msra.mxu0 0.0
  %64 = vmatprep.subr.mxu0 0.0
  %65 = vmatpush1.msra.mxu0 %v43
  %66 = vmatprep.subr.mxu0 0.0
  %67 = vmatpush1.msra.mxu0 %v42
  %68 = vmatprep.subr.mxu0 0.0
  %69 = vmatpush1.msra.mxu0 %v41
  %70 = vmatprep.subr.mxu0 0.0
  %71 = vmatpush1.msra.mxu0 %v40
  %72 = vmatprep.subr.mxu0 0.0
  %73 = vmatpush1.msra.mxu0 %v39
  %74 = vmatprep.subr.mxu0 0.0
  %75 = vmatpush1.msra.mxu0 %v38
  %76 = vmatprep.subr.mxu0 0.0
  %77 = vmatpush1.msra.mxu0 %v37
  %78 = vmatprep.subr.mxu0 0.0
  %79 = vmatpush1.msra.mxu0 %v36
  %80 = vmatprep.subr.mxu0 0.0
  %81 = vmatpush2.msra.mxu0 0.0
  %82 = vmatprep.subr.mxu0 0.0
  %83 = vmatpush2.msra.mxu0 0.0
  %84 = vmatprep.subr.mxu0 0.0
  %85 = vmatpush2.msra.mxu0 0.0
  %86 = vmatprep.subr.mxu0 0.0
  %87 = vmatpush2.msra.mxu0 0.0
  %88 = vmatprep.subr.mxu0 0.0
  %89 = vmatpush2.msra.mxu0 0.0
  %90 = vmatprep.subr.mxu0 0.0
  %91 = vmatpush2.msra.mxu0 0.0
  %92 = vmatprep.subr.mxu0 0.0
  %93 = vmatpush2.msra.mxu0 0.0
  %94 = vmatprep.subr.mxu0 0.0
  %95 = vmatpush2.msra.mxu0 0.0
  %96 = vmatprep.subr.mxu0 0.0
  %97 = vmatpush2.msra.mxu0 0.0
  %98 = vmatprep.subr.mxu0 0.0
  %99 = vmatpush2.msra.mxu0 0.0
  %100 = vmatprep.subr.mxu0 0.0
  %101 = vmatpush2.msra.mxu0 0.0
  %102 = vmatprep.subr.mxu0 0.0
  %103 = vmatpush2.msra.mxu0 0.0
  %104 = vmatprep.subr.mxu0 0.0
  %105 = vmatpush2.msra.mxu0 0.0
  %106 = vmatprep.subr.mxu0 0.0
  %107 = vmatpush2.msra.mxu0 0.0
  %108 = vmatprep.subr.mxu0 0.0
  %109 = vmatpush2.msra.mxu0 0.0
  %110 = vmatprep.subr.mxu0 0.0
  %111 = vmatpush2.msra.mxu0 0.0
  %112 = vmatprep.mubr.f32.mxu0 0.0
  %113 = vmatmul.mubr.f32.gmra.mxu0 %v46
  %v114 = vpop.f32.mrf.mxu0
  %v115 = vadd.f32 0.0, %v114
  %v116 = vpop.f32.mrf.mxu0
  %117 = vdwg.mxu0
  %v118 = vmul.f32 %v115, %v115
  %v120 = vrot.slane %v118, 6
  %v122 = vsub.f32 %v115, %v120
  %v123 = vadd.f32 %v122, 1e-05
  %v124 = vrsqrt.pop %v123
  %v125 = vmul.f32 %v123, %v124
  %vm126 = vcmp.eq.f32.partialorder %v123, inf
  %v127 = vsel %vm126, %v123, %v125
  %vm128 = vcmp.eq.f32.partialorder %v123, 0.0
  %v129 = vand.u32 %v123, 2147483648
  %v130 = vsel %vm128, %v129, %v127
  %v132 = vrot.slane %v130, 2
  %v135 = vrot.slane %v115, 6
  %v137 = vsel %vm34, %v132, %v135
  %v138 = vld [vmem:[%s2] sm:$0xff]
  %v140 = vcombine.high %v138, %v138
  %vm141 = vcmask 31744
  %v143 = vsel %vm141, %v137, 0
  %vm145 = vcmask 1043456
  %v146 = vsel %vm145, %v138, 0
  %v148 = vsel %vm145, %v140, 0
  %150 = vmatprep.subr.mxu0 0.0
  %151 = vmatpush1.msra.mxu0 0.0
  %152 = vmatprep.subr.mxu0 0.0
  %153 = vmatpush1.msra.mxu0 0.0
  %154 = vmatprep.subr.mxu0 0.0
  %155 = vmatpush1.msra.mxu0 0.0
  %156 = vmatprep.subr.mxu0 0.0
  %157 = vmatpush1.msra.mxu0 0.0
  %158 = vmatprep.subr.mxu0 0.0
  %159 = vmatpush1.msra.mxu0 0.0
  %160 = vmatprep.subr.mxu0 0.0
  %161 = vmatpush1.msra.mxu0 0.0
  %162 = vmatprep.subr.mxu0 0.0
  %163 = vmatpush1.msra.mxu0 0.0
  %164 = vmatprep.subr.mxu0 0.0
  %165 = vmatpush1.msra.mxu0 0.0
  %166 = vmatprep.subr.mxu0 0.0
  %167 = vmatpush1.msra.mxu0 0.0
  %168 = vmatprep.subr.mxu0 0.0
  %169 = vmatpush1.msra.mxu0 0.0
  %170 = vmatprep.subr.mxu0 0.0
  %171 = vmatpush1.msra.mxu0 0.0
  %172 = vmatprep.subr.mxu0 0.0
  %173 = vmatpush1.msra.mxu0 0.0
  %174 = vmatprep.subr.mxu0 0.0
  %175 = vmatpush1.msra.mxu0 0.0
  %176 = vmatprep.subr.mxu0 0.0
  %177 = vmatpush1.msra.mxu0 0.0
  %178 = vmatprep.subr.mxu0 0.0
  %179 = vmatpush1.msra.mxu0 0.0
  %180 = vmatprep.subr.mxu0 %v148
  %181 = vmatpush1.msra.mxu0 %v146
  %182 = vmatprep.subr.mxu0 0.0
  %183 = vmatpush2.msra.mxu0 0.0
  %184 = vmatprep.subr.mxu0 0.0
  %185 = vmatpush2.msra.mxu0 0.0
  %186 = vmatprep.subr.mxu0 0.0
  %187 = vmatpush2.msra.mxu0 0.0
  %188 = vmatprep.subr.mxu0 0.0
  %189 = vmatpush2.msra.mxu0 0.0
  %190 = vmatprep.subr.mxu0 0.0
  %191 = vmatpush2.msra.mxu0 0.0
  %192 = vmatprep.subr.mxu0 0.0
  %193 = vmatpush2.msra.mxu0 0.0
  %194 = vmatprep.subr.mxu0 0.0
  %195 = vmatpush2.msra.mxu0 0.0
  %196 = vmatprep.subr.mxu0 0.0
  %197 = vmatpush2.msra.mxu0 0.0
  %198 = vmatprep.subr.mxu0 0.0
  %199 = vmatpush2.msra.mxu0 0.0
  %200 = vmatprep.subr.mxu0 0.0
  %201 = vmatpush2.msra.mxu0 0.0
  %202 = vmatprep.subr.mxu0 0.0
  %203 = vmatpush2.msra.mxu0 0.0
  %204 = vmatprep.subr.mxu0 0.0
  %205 = vmatpush2.msra.mxu0 0.0
  %206 = vmatprep.subr.mxu0 0.0
  %207 = vmatpush2.msra.mxu0 0.0
  %208 = vmatprep.subr.mxu0 0.0
  %209 = vmatpush2.msra.mxu0 0.0
  %210 = vmatprep.subr.mxu0 0.0
  %211 = vmatpush2.msra.mxu0 0.0
  %212 = vmatprep.subr.mxu0 0.0
  %213 = vmatpush2.msra.mxu0 0.0
  %214 = vmatprep.mubr.f32.mxu0 0.0
  %215 = vmatmul.mubr.f32.gmra.mxu0 %v143
  %v216 = vpop.f32.mrf.mxu0
  %v217 = vadd.f32 0.0, %v216
  %v218 = vpop.f32.mrf.mxu0
  %v219 = vadd.f32 0.0, %v218
  %220 = vdwg.mxu0
  %v222 = vrot.slane %v219, 2
  %223 = vrot.lane.b32.xlu0 %v222, 64
  %v224 = vpop.permute.xlu0 %223
  %v226 = vadd.f32 %v219, %v224
  %v228 = vrot.slane %v217, 2
  %v230 = vsub.f32 %v29, %v228
  %v231 = vrcp.pop %v217
  %v232 = vmul.f32 %v230, %v231
  %v233 = vld [vmem:[%s3] sm:$0xff]
  %v234 = vld [vmem:[%s3 + $0x8] sm:$0xff]
  %v235 = vld [vmem:[%s3 + $0x10] sm:$0xff]
  %v236 = vld [vmem:[%s3 + $0x18] sm:$0xff]
  %v237 = vld [vmem:[%s3 + $0x20] sm:$0xff]
  %v238 = vld [vmem:[%s3 + $0x28] sm:$0xff]
  %v239 = vld [vmem:[%s3 + $0x30] sm:$0xff]
  %v240 = vld [vmem:[%s3 + $0x38] sm:$0xff]
  %v242 = vsel %vm44, %v232, 0
  %244 = vmatprep.subr.mxu0 0.0
  %245 = vmatpush1.msra.mxu0 0.0
  %246 = vmatprep.subr.mxu0 0.0
  %247 = vmatpush1.msra.mxu0 0.0
  %248 = vmatprep.subr.mxu0 0.0
  %249 = vmatpush1.msra.mxu0 0.0
  %250 = vmatprep.subr.mxu0 0.0
  %251 = vmatpush1.msra.mxu0 0.0
  %252 = vmatprep.subr.mxu0 0.0
  %253 = vmatpush1.msra.mxu0 0.0
  %254 = vmatprep.subr.mxu0 0.0
  %255 = vmatpush1.msra.mxu0 0.0
  %256 = vmatprep.subr.mxu0 0.0
  %257 = vmatpush1.msra.mxu0 0.0
  %258 = vmatprep.subr.mxu0 0.0
  %259 = vmatpush1.msra.mxu0 0.0
  %260 = vmatprep.subr.mxu0 0.0
  %261 = vmatpush1.msra.mxu0 %v240
  %262 = vmatprep.subr.mxu0 0.0
  %263 = vmatpush1.msra.mxu0 %v239
  %264 = vmatprep.subr.mxu0 0.0
  %265 = vmatpush1.msra.mxu0 %v238
  %266 = vmatprep.subr.mxu0 0.0
  %267 = vmatpush1.msra.mxu0 %v237
  %268 = vmatprep.subr.mxu0 0.0
  %269 = vmatpush1.msra.mxu0 %v236
  %270 = vmatprep.subr.mxu0 0.0
  %271 = vmatpush1.msra.mxu0 %v235
  %272 = vmatprep.subr.mxu0 0.0
  %273 = vmatpush1.msra.mxu0 %v234
  %274 = vmatprep.subr.mxu0 0.0
  %275 = vmatpush1.msra.mxu0 %v233
  %276 = vmatprep.subr.mxu0 0.0
  %277 = vmatpush2.msra.mxu0 0.0
  %278 = vmatprep.subr.mxu0 0.0
  %279 = vmatpush2.msra.mxu0 0.0
  %280 = vmatprep.subr.mxu0 0.0
  %281 = vmatpush2.msra.mxu0 0.0
  %282 = vmatprep.subr.mxu0 0.0
  %283 = vmatpush2.msra.mxu0 0.0
  %284 = vmatprep.subr.mxu0 0.0
  %285 = vmatpush2.msra.mxu0 0.0
  %286 = vmatprep.subr.mxu0 0.0
  %287 = vmatpush2.msra.mxu0 0.0
  %288 = vmatprep.subr.mxu0 0.0
  %289 = vmatpush2.msra.mxu0 0.0
  %290 = vmatprep.subr.mxu0 0.0
  %291 = vmatpush2.msra.mxu0 0.0
  %292 = vmatprep.subr.mxu0 0.0
  %293 = vmatpush2.msra.mxu0 0.0
  %294 = vmatprep.subr.mxu0 0.0
  %295 = vmatpush2.msra.mxu0 0.0
  %296 = vmatprep.subr.mxu0 0.0
  %297 = vmatpush2.msra.mxu0 0.0
  %298 = vmatprep.subr.mxu0 0.0
  %299 = vmatpush2.msra.mxu0 0.0
  %300 = vmatprep.subr.mxu0 0.0
  %301 = vmatpush2.msra.mxu0 0.0
  %302 = vmatprep.subr.mxu0 0.0
  %303 = vmatpush2.msra.mxu0 0.0
  %304 = vmatprep.subr.mxu0 0.0
  %305 = vmatpush2.msra.mxu0 0.0
  %306 = vmatprep.subr.mxu0 0.0
  %307 = vmatpush2.msra.mxu0 0.0
  %308 = vmatprep.mubr.f32.mxu0 0.0
  %309 = vmatmul.mubr.f32.gmra.mxu0 %v242
  %v310 = vpop.f32.mrf.mxu0
  %v311 = vadd.f32 0.0, %v310
  %v312 = vpop.f32.mrf.mxu0
  %313 = vdwg.mxu0
  %314 = vrot.lane.b32.xlu0 %v217, 64
  %v315 = vpop.permute.xlu0 %314
  %v317 = vmul.f32 %v311, %v315
  %318 = vrot.lane.b32.xlu0 %v228, 64
  %v319 = vpop.permute.xlu0 %318
  %v321 = vadd.f32 %v317, %v319
  %323 = vrot.lane.b32.xlu0 %v226, 4
  %v324 = vpop.permute.xlu0 %323
  %v326 = vadd.f32 %v115, %v324
  %v327 = vld [vmem:[%s4] sm:$0x1]
  %v329 = vlaneseq
  %v330 = vshrl.u32 %v329, 7
  %v331 = vsub.s32 0, %v330
  %v332 = vrot.slane %v327, %v331
  %333 = vrot.lane.b32.xlu0 %v332, 4
  %v334 = vpop.permute.xlu0 %333
  %v336 = vadd.f32 %v326, %v334
  %v337 = vmax.f32 %v336, 0.0
  %v338 = vld [vmem:[%s5] sm:$0xff]
  %v339 = vld [vmem:[%s5 + $0x8] sm:$0xff]
  %v340 = vld [vmem:[%s5 + $0x10] sm:$0xff]
  %v341 = vld [vmem:[%s5 + $0x18] sm:$0xff]
  %v342 = vld [vmem:[%s5 + $0x20] sm:$0xff]
  %v343 = vld [vmem:[%s5 + $0x28] sm:$0xff]
  %v344 = vld [vmem:[%s5 + $0x30] sm:$0xff]
  %v345 = vld [vmem:[%s5 + $0x38] sm:$0xff]
  %v346 = vld [vmem:[%s6] sm:$0x1]
  %v348 = vlaneseq
  %v349 = vshrl.u32 %v348, 7
  %v350 = vsub.s32 0, %v349
  %v351 = vrot.slane %v346, %v350
  %354 = vrot.lane.b32.xlu0 %v337, 124
  %v355 = vpop.permute.xlu0 %354
  %v356 = vsel %vm44, %v355, 0
  %358 = vmatprep.subr.mxu0 0.0
  %359 = vmatpush1.msra.mxu0 0.0
  %360 = vmatprep.subr.mxu0 0.0
  %361 = vmatpush1.msra.mxu0 0.0
  %362 = vmatprep.subr.mxu0 0.0
  %363 = vmatpush1.msra.mxu0 0.0
  %364 = vmatprep.subr.mxu0 0.0
  %365 = vmatpush1.msra.mxu0 0.0
  %366 = vmatprep.subr.mxu0 0.0
  %367 = vmatpush1.msra.mxu0 0.0
  %368 = vmatprep.subr.mxu0 0.0
  %369 = vmatpush1.msra.mxu0 0.0
  %370 = vmatprep.subr.mxu0 0.0
  %371 = vmatpush1.msra.mxu0 0.0
  %372 = vmatprep.subr.mxu0 0.0
  %373 = vmatpush1.msra.mxu0 0.0
  %374 = vmatprep.subr.mxu0 0.0
  %375 = vmatpush1.msra.mxu0 %v345
  %376 = vmatprep.subr.mxu0 0.0
  %377 = vmatpush1.msra.mxu0 %v344
  %378 = vmatprep.subr.mxu0 0.0
  %379 = vmatpush1.msra.mxu0 %v343
  %380 = vmatprep.subr.mxu0 0.0
  %381 = vmatpush1.msra.mxu0 %v342
  %382 = vmatprep.subr.mxu0 0.0
  %383 = vmatpush1.msra.mxu0 %v341
  %384 = vmatprep.subr.mxu0 0.0
  %385 = vmatpush1.msra.mxu0 %v340
  %386 = vmatprep.subr.mxu0 0.0
  %387 = vmatpush1.msra.mxu0 %v339
  %388 = vmatprep.subr.mxu0 0.0
  %389 = vmatpush1.msra.mxu0 %v338
  %390 = vmatprep.subr.mxu0 0.0
  %391 = vmatpush2.msra.mxu0 0.0
  %392 = vmatprep.subr.mxu0 0.0
  %393 = vmatpush2.msra.mxu0 0.0
  %394 = vmatprep.subr.mxu0 0.0
  %395 = vmatpush2.msra.mxu0 0.0
  %396 = vmatprep.subr.mxu0 0.0
  %397 = vmatpush2.msra.mxu0 0.0
  %398 = vmatprep.subr.mxu0 0.0
  %399 = vmatpush2.msra.mxu0 0.0
  %400 = vmatprep.subr.mxu0 0.0
  %401 = vmatpush2.msra.mxu0 0.0
  %402 = vmatprep.subr.mxu0 0.0
  %403 = vmatpush2.msra.mxu0 0.0
  %404 = vmatprep.subr.mxu0 0.0
  %405 = vmatpush2.msra.mxu0 0.0
  %406 = vmatprep.subr.mxu0 0.0
  %407 = vmatpush2.msra.mxu0 0.0
  %408 = vmatprep.subr.mxu0 0.0
  %409 = vmatpush2.msra.mxu0 0.0
  %410 = vmatprep.subr.mxu0 0.0
  %411 = vmatpush2.msra.mxu0 0.0
  %412 = vmatprep.subr.mxu0 0.0
  %413 = vmatpush2.msra.mxu0 0.0
  %414 = vmatprep.subr.mxu0 0.0
  %415 = vmatpush2.msra.mxu0 0.0
  %416 = vmatprep.subr.mxu0 0.0
  %417 = vmatpush2.msra.mxu0 0.0
  %418 = vmatprep.subr.mxu0 0.0
  %419 = vmatpush2.msra.mxu0 0.0
  %420 = vmatprep.subr.mxu0 0.0
  %421 = vmatpush2.msra.mxu0 0.0
  %422 = vmatprep.mubr.f32.mxu0 0.0
  %423 = vmatmul.mubr.f32.gmra.mxu0 %v356
  %v424 = vpop.f32.mrf.mxu0
  %v425 = vadd.f32 %v351, %v424
  %v426 = vpop.f32.mrf.mxu0
  %427 = vdwg.mxu0
  %v428 = vmax.f32 %v425, 0.0
  %v429 = vld [vmem:[%s7] sm:$0xff]
  %v430 = vld [vmem:[%s7 + $0x8] sm:$0xff]
  %v431 = vld [vmem:[%s7 + $0x10] sm:$0xff]
  %v432 = vld [vmem:[%s7 + $0x18] sm:$0xff]
  %v433 = vld [vmem:[%s7 + $0x20] sm:$0xff]
  %v434 = vld [vmem:[%s7 + $0x28] sm:$0xff]
  %v435 = vld [vmem:[%s7 + $0x30] sm:$0xff]
  %v436 = vld [vmem:[%s7 + $0x38] sm:$0xff]
  %v438 = vsel %vm44, %v428, 0
  %440 = vmatprep.subr.mxu0 0.0
  %441 = vmatpush1.msra.mxu0 0.0
  %442 = vmatprep.subr.mxu0 0.0
  %443 = vmatpush1.msra.mxu0 0.0
  %444 = vmatprep.subr.mxu0 0.0
  %445 = vmatpush1.msra.mxu0 0.0
  %446 = vmatprep.subr.mxu0 0.0
  %447 = vmatpush1.msra.mxu0 0.0
  %448 = vmatprep.subr.mxu0 0.0
  %449 = vmatpush1.msra.mxu0 0.0
  %450 = vmatprep.subr.mxu0 0.0
  %451 = vmatpush1.msra.mxu0 0.0
  %452 = vmatprep.subr.mxu0 0.0
  %453 = vmatpush1.msra.mxu0 0.0
  %454 = vmatprep.subr.mxu0 0.0
  %455 = vmatpush1.msra.mxu0 0.0
  %456 = vmatprep.subr.mxu0 0.0
  %457 = vmatpush1.msra.mxu0 %v436
  %458 = vmatprep.subr.mxu0 0.0
  %459 = vmatpush1.msra.mxu0 %v435
  %460 = vmatprep.subr.mxu0 0.0
  %461 = vmatpush1.msra.mxu0 %v434
  %462 = vmatprep.subr.mxu0 0.0
  %463 = vmatpush1.msra.mxu0 %v433
  %464 = vmatprep.subr.mxu0 0.0
  %465 = vmatpush1.msra.mxu0 %v432
  %466 = vmatprep.subr.mxu0 0.0
  %467 = vmatpush1.msra.mxu0 %v431
  %468 = vmatprep.subr.mxu0 0.0
  %469 = vmatpush1.msra.mxu0 %v430
  %470 = vmatprep.subr.mxu0 0.0
  %471 = vmatpush1.msra.mxu0 %v429
  %472 = vmatprep.subr.mxu0 0.0
  %473 = vmatpush2.msra.mxu0 0.0
  %474 = vmatprep.subr.mxu0 0.0
  %475 = vmatpush2.msra.mxu0 0.0
  %476 = vmatprep.subr.mxu0 0.0
  %477 = vmatpush2.msra.mxu0 0.0
  %478 = vmatprep.subr.mxu0 0.0
  %479 = vmatpush2.msra.mxu0 0.0
  %480 = vmatprep.subr.mxu0 0.0
  %481 = vmatpush2.msra.mxu0 0.0
  %482 = vmatprep.subr.mxu0 0.0
  %483 = vmatpush2.msra.mxu0 0.0
  %484 = vmatprep.subr.mxu0 0.0
  %485 = vmatpush2.msra.mxu0 0.0
  %486 = vmatprep.subr.mxu0 0.0
  %487 = vmatpush2.msra.mxu0 0.0
  %488 = vmatprep.subr.mxu0 0.0
  %489 = vmatpush2.msra.mxu0 0.0
  %490 = vmatprep.subr.mxu0 0.0
  %491 = vmatpush2.msra.mxu0 0.0
  %492 = vmatprep.subr.mxu0 0.0
  %493 = vmatpush2.msra.mxu0 0.0
  %494 = vmatprep.subr.mxu0 0.0
  %495 = vmatpush2.msra.mxu0 0.0
  %496 = vmatprep.subr.mxu0 0.0
  %497 = vmatpush2.msra.mxu0 0.0
  %498 = vmatprep.subr.mxu0 0.0
  %499 = vmatpush2.msra.mxu0 0.0
  %500 = vmatprep.subr.mxu0 0.0
  %501 = vmatpush2.msra.mxu0 0.0
  %502 = vmatprep.subr.mxu0 0.0
  %503 = vmatpush2.msra.mxu0 0.0
  %504 = vmatprep.mubr.f32.mxu0 0.0
  %505 = vmatmul.mubr.f32.gmra.mxu0 %v438
  %v506 = vpop.f32.mrf.mxu0
  %v507 = vadd.f32 0.0, %v506
  %v508 = vpop.f32.mrf.mxu0
  %509 = vdwg.mxu0
  %v510 = vlaneseq
  %v511 = vand.u32 %v510, 127
  %vm512 = vcmp.eq.s32.totalorder %v511, 0
  %v513 = vmul.f32 %v507, 1.442695
  %v514 = vpow.pop %v513
  %v515 = vsel %vm512, %v514, %v507
  %517 = vrot.lane.b32.xlu0 %v515, 64
  %v518 = vpop.permute.xlu0 %517
  %v520 = vsel %vm44, %v321, %v518
  %vm521 = vcmask 662528
  %v522 = vsel %vm521, %v520, 0.0
  %523 = vst [vmem:[%s8] sm:$0x3] %v522
  // Predicated region
  $region34: #{model_forward.1} parent=0 // pred_check
    _
  $region35: #{model_forward.1} parent=0 // pred_check_branch
    %525 = sbr.rel (0) target = $region37
  $region36: #{model_forward.1} parent=0 // pred_region
    _
  $region37: #{model_forward.1} parent=0 // pred_fallthru
    _
  // Predicated region
  $region38: #{model_forward.1} parent=0 // pred_check
    _
  $region39: #{model_forward.1} parent=0 // pred_check_branch
    %527 = sbr.rel (0) target = $region41
  $region40: #{model_forward.1} parent=0 // pred_region
    _
  $region41: #{model_forward.1} parent=0 // pred_fallthru
    _

</llo_original>
